<compile_context>
chip_gen: v7x
topology: tpu7x:2x2x1
jax: 0.10.0
libtpu: 0.0.40
codegen_flags: <defaults>
</compile_context>

<pallas_src>
import functools

import jax
import jax.numpy as jnp
from jax import lax
from jax.experimental import pallas as pl
from jax.experimental.pallas import tpu as pltpu


# ------------------------------ tile picking -------------------------------

def _pick_tile(dim, candidates=(256, 128, 64, 32, 16, 8)):
    """Largest candidate tile that evenly divides `dim`; else the full dim."""
    for t in candidates:
        if t <= dim and dim % t == 0:
            return t
    return dim


# ------------------------- QKV projection kernel ---------------------------

def _qkv_proj_kernel(x_ref, wq_ref, wk_ref, wv_ref,
                     q_ref, k_ref, v_ref,
                     acc_q, acc_k, acc_v, *, scale):
    """Tiled matmul producing q (pre-scaled), k, v tiles. Grid: (M, N, K)."""
    kk = pl.program_id(2)

    @pl.when(kk == 0)
    def _init():
        acc_q[...] = jnp.zeros(acc_q.shape, acc_q.dtype)
        acc_k[...] = jnp.zeros(acc_k.shape, acc_k.dtype)
        acc_v[...] = jnp.zeros(acc_v.shape, acc_v.dtype)

    # bf16 MXU operands, f32 accumulation; x tile is cast once and shared by
    # the three matmuls.
    xb = x_ref[...].astype(jnp.bfloat16)
    acc_q[...] += jnp.dot(xb, wq_ref[...].astype(jnp.bfloat16),
                          preferred_element_type=jnp.float32)
    acc_k[...] += jnp.dot(xb, wk_ref[...].astype(jnp.bfloat16),
                          preferred_element_type=jnp.float32)
    acc_v[...] += jnp.dot(xb, wv_ref[...].astype(jnp.bfloat16),
                          preferred_element_type=jnp.float32)

    @pl.when(kk == pl.num_programs(2) - 1)
    def _finalize():
        # Fold the softmax scale into q here (M*C muls instead of N*N per tile).
        q_ref[...] = (acc_q[...] * scale).astype(q_ref.dtype)
        k_ref[...] = acc_k[...].astype(k_ref.dtype)
        v_ref[...] = acc_v[...].astype(v_ref.dtype)


# ------------------------ flash attention kernel ---------------------------

def _flash_attn_kernel(q_ref, k_ref, v_ref, o_ref,
                       m_sc, l_sc, acc_sc, *, num_heads, head_dim):
    """Grid: (B, num_q_tiles, num_kv_tiles); KV axis last ("arbitrary").

    Blocks are (1, tile, C); heads are processed with a static per-head loop
    (dot_general per head), stats/acc per head in VMEM scratch.
    """
    kv = pl.program_id(2)

    @pl.when(kv == 0)
    def _init():
        m_sc[...] = jnp.full(m_sc.shape, -jnp.inf, dtype=m_sc.dtype)
        l_sc[...] = jnp.zeros(l_sc.shape, l_sc.dtype)
        acc_sc[...] = jnp.zeros(acc_sc.shape, acc_sc.dtype)

    # Lane-dense (tile, C) blocks; q/k/v arrive in bf16 already (no-op cast).
    qb = q_ref[0].astype(jnp.bfloat16)   # (tq, C)  -- already pre-scaled
    kb = k_ref[0].astype(jnp.bfloat16)   # (tkv, C)
    vb = v_ref[0].astype(jnp.bfloat16)   # (tkv, C)

    for h in range(num_heads):
        sl = slice(h * head_dim, (h + 1) * head_dim)
        qh = qb[:, sl]                   # (tq, hd)
        kh = kb[:, sl]                   # (tkv, hd)
        vh = vb[:, sl]                   # (tkv, hd)

        # scores: contract on head_dim of both operands (no K transpose).
        s = lax.dot_general(qh, kh, (((1,), (1,)), ((), ())),
                            preferred_element_type=jnp.float32)   # (tq, tkv)

        m_prev = m_sc[h]                                           # (tq, 1)
        m_new = jnp.maximum(m_prev, jnp.max(s, axis=-1, keepdims=True))
        alpha = jnp.exp(m_prev - m_new)
        p = jnp.exp(s - m_new)                                     # f32 softmax math
        l_sc[h] = alpha * l_sc[h] + jnp.sum(p, axis=-1, keepdims=True)

        pv = lax.dot_general(p.astype(jnp.bfloat16), vh,
                             (((1,), (0,)), ((), ())),
                             preferred_element_type=jnp.float32)   # (tq, hd)
        acc_sc[h] = alpha * acc_sc[h] + pv
        m_sc[h] = m_new

    @pl.when(kv == pl.num_programs(2) - 1)
    def _finalize():
        # Normalize each head and assemble the full (tq, C) context so the
        # output block is written with a single unmasked lane-dense store.
        pieces = []
        for h in range(num_heads):
            inv_l = pl.reciprocal(l_sc[h], approx=True)            # (tq, 1)
            pieces.append(acc_sc[h] * inv_l)                       # (tq, hd)
        ctx = jnp.concatenate(pieces, axis=-1)                     # (tq, C)
        o_ref[0] = ctx.astype(o_ref.dtype)


# ------------------------------ Python wrapper ------------------------------

def attention_forward(x, w_qkv, num_heads):
    """x: (B, N, C) float32, w_qkv: (C, 3C). Returns value: (B, N, C)."""
    B, N, C = x.shape
    assert C % num_heads == 0
    head_dim = C // num_heads
    scale = head_dim ** (-0.5)
    M = B * N

    # Split the (small) weight into per-slab (C, C) matrices (one-time slice;
    # keeps the weight BlockSpecs at full-dim / (8,128)-friendly shapes).
    wq = w_qkv[:, 0 * C:1 * C]
    wk = w_qkv[:, 1 * C:2 * C]
    wv = w_qkv[:, 2 * C:3 * C]

    x2 = x.reshape(M, C)  # contiguous reshape; no transpose glue

    # --- QKV projection: tiled MXU matmul, 3 bf16 outputs sharing the x read ---
    tm = _pick_tile(M)
    tn = _pick_tile(C)
    tkc = _pick_tile(C)
    q2, k2, v2 = pl.pallas_call(
        functools.partial(_qkv_proj_kernel, scale=scale),
        out_shape=(
            jax.ShapeDtypeStruct((M, C), jnp.bfloat16),
            jax.ShapeDtypeStruct((M, C), jnp.bfloat16),
            jax.ShapeDtypeStruct((M, C), jnp.bfloat16),
        ),
        grid=(M // tm, C // tn, C // tkc),
        in_specs=[
            pl.BlockSpec((tm, tkc), lambda m, n, kk: (m, kk)),
            pl.BlockSpec((tkc, tn), lambda m, n, kk: (kk, n)),
            pl.BlockSpec((tkc, tn), lambda m, n, kk: (kk, n)),
            pl.BlockSpec((tkc, tn), lambda m, n, kk: (kk, n)),
        ],
        out_specs=(
            pl.BlockSpec((tm, tn), lambda m, n, kk: (m, n)),
            pl.BlockSpec((tm, tn), lambda m, n, kk: (m, n)),
            pl.BlockSpec((tm, tn), lambda m, n, kk: (m, n)),
        ),
        scratch_shapes=[
            pltpu.VMEM((tm, tn), jnp.float32),
            pltpu.VMEM((tm, tn), jnp.float32),
            pltpu.VMEM((tm, tn), jnp.float32),
        ],
        compiler_params=pltpu.CompilerParams(
            dimension_semantics=("parallel", "parallel", "arbitrary")),
    )(x2, wq, wk, wv)

    q3 = q2.reshape(B, N, C)
    k3 = k2.reshape(B, N, C)
    v3 = v2.reshape(B, N, C)

    # --- Flash attention: grid (B, q_tiles, kv_tiles); lane-dense (B,N,C) out ---
    tq = _pick_tile(N)
    tkv = _pick_tile(N)
    out = pl.pallas_call(
        functools.partial(_flash_attn_kernel,
                          num_heads=num_heads, head_dim=head_dim),
        out_shape=jax.ShapeDtypeStruct((B, N, C), x.dtype),
        grid=(B, N // tq, N // tkv),
        in_specs=[
            pl.BlockSpec((1, tq, C), lambda b, qi, ki: (b, qi, 0)),
            pl.BlockSpec((1, tkv, C), lambda b, qi, ki: (b, ki, 0)),
            pl.BlockSpec((1, tkv, C), lambda b, qi, ki: (b, ki, 0)),
        ],
        out_specs=pl.BlockSpec((1, tq, C), lambda b, qi, ki: (b, qi, 0)),
        scratch_shapes=[
            pltpu.VMEM((num_heads, tq, 1), jnp.float32),          # running max
            pltpu.VMEM((num_heads, tq, 1), jnp.float32),          # running sum
            pltpu.VMEM((num_heads, tq, head_dim), jnp.float32),   # accumulator
        ],
        compiler_params=pltpu.CompilerParams(
            dimension_semantics=("parallel", "parallel", "arbitrary")),
    )(q3, k3, v3)

    return out  # (B, N, C) — already in the torch transpose(1,2).reshape layout


# ------------------------------ reference (jnp) ------------------------------

def attention_reference(x, w_qkv, num_heads):
    B, N, C = x.shape
    head_dim = C // num_heads
    scale = head_dim ** (-0.5)
    qkv = (x @ w_qkv).reshape(B, N, 3, num_heads, head_dim).transpose(2, 0, 3, 1, 4)
    q, k, v = qkv[0], qkv[1], qkv[2]
    s = jnp.einsum("bhqd,bhkd->bhqk", q, k) * scale
    p = jax.nn.softmax(s, axis=-1)
    ctx = jnp.einsum("bhqk,bhkd->bhqd", p, v)
    return ctx.transpose(0, 2, 1, 3).reshape(B, N, C)


# ----------------------------------- main ------------------------------------

if __name__ == "__main__":
    B, N, C = 2, 8, 32
    num_heads = 8  # head_dim = 4

    key = jax.random.PRNGKey(0)
    kx, kw = jax.random.split(key)
    x = jax.random.normal(kx, (B, N, C), dtype=jnp.float32)
    # nn.Linear(dim, 3*dim, bias=False): weight (3C, C); stored transposed (C, 3C)
    w_qkv = (jax.random.normal(kw, (C, 3 * C), dtype=jnp.float32) * 0.02)

    out = attention_forward(x, w_qkv, num_heads)
    out = jax.block_until_ready(out)

    ref = attention_reference(x, w_qkv, num_heads)
    assert out.shape == (B, N, C)
    # bf16 MXU operands / bf16 q,k,v intermediates (f32 accumulate, f32 softmax
    # stats) -> loosened tolerance vs the all-f32 reference.
    assert jnp.allclose(out, ref, atol=2e-2, rtol=2e-2), "mismatch vs reference"

    print("KERNEL_OK")
</pallas_src>

<mosaic_0001>
module attributes {stable_mosaic.version = 11 : i64} {
  func.func @_qkv_proj_kernel(%arg0: i32, %arg1: i32, %arg2: i32, %arg3: memref<16x32xf32, #tpu.memory_space<vmem>>, %arg4: memref<32x32xf32, #tpu.memory_space<vmem>>, %arg5: memref<32x32xf32, #tpu.memory_space<vmem>>, %arg6: memref<32x32xf32, #tpu.memory_space<vmem>>, %arg7: memref<16x32xbf16, #tpu.memory_space<vmem>>, %arg8: memref<16x32xbf16, #tpu.memory_space<vmem>>, %arg9: memref<16x32xbf16, #tpu.memory_space<vmem>>, %arg10: memref<16x32xf32, #tpu.memory_space<vmem>>, %arg11: memref<16x32xf32, #tpu.memory_space<vmem>>, %arg12: memref<16x32xf32, #tpu.memory_space<vmem>>) attributes {dimension_semantics = [#tpu.dimension_semantics<parallel>, #tpu.dimension_semantics<parallel>, #tpu.dimension_semantics<arbitrary>], iteration_bounds = array<i64: 1, 1, 1>, scalar_prefetch = 0 : i64, scratch_operands = 3 : i64, tpu.core_type = #tpu.core_type<tc>, window_params = [{transform_indices = @transform_0, window_bounds = array<i64: 16, 32>}, {transform_indices = @transform_1, window_bounds = array<i64: 32, 32>}, {transform_indices = @transform_2, window_bounds = array<i64: 32, 32>}, {transform_indices = @transform_3, window_bounds = array<i64: 32, 32>}, {transform_indices = @transform_4, window_bounds = array<i64: 16, 32>}, {transform_indices = @transform_5, window_bounds = array<i64: 16, 32>}, {transform_indices = @transform_6, window_bounds = array<i64: 16, 32>}]} {
    %c0_i32 = arith.constant 0 : i32
    %0 = arith.cmpi eq, %arg2, %c0_i32 : i32
    %1 = arith.extui %0 : i1 to i32
    %c0_i32_0 = arith.constant 0 : i32
    %2 = arith.cmpi ne, %1, %c0_i32_0 : i32
    scf.if %2 {
      %cst_24 = arith.constant 0.000000e+00 : f32
      %26 = vector.broadcast %cst_24 : f32 to vector<16x32xf32>
      %c0_25 = arith.constant 0 : index
      %c0_26 = arith.constant 0 : index
      %27 = vector.load %arg10[%c0_25, %c0_26] : memref<16x32xf32, #tpu.memory_space<vmem>>, vector<16x32xf32>
      tpu.vector_store %arg10[%c0_25, %c0_26], %26 {strides = array<i32>} : memref<16x32xf32, #tpu.memory_space<vmem>>, vector<16x32xf32>,
      %cst_27 = arith.constant 0.000000e+00 : f32
      %28 = vector.broadcast %cst_27 : f32 to vector<16x32xf32>
      %c0_28 = arith.constant 0 : index
      %c0_29 = arith.constant 0 : index
      %29 = vector.load %arg11[%c0_28, %c0_29] : memref<16x32xf32, #tpu.memory_space<vmem>>, vector<16x32xf32>
      tpu.vector_store %arg11[%c0_28, %c0_29], %28 {strides = array<i32>} : memref<16x32xf32, #tpu.memory_space<vmem>>, vector<16x32xf32>,
      %cst_30 = arith.constant 0.000000e+00 : f32
      %30 = vector.broadcast %cst_30 : f32 to vector<16x32xf32>
      %c0_31 = arith.constant 0 : index
      %c0_32 = arith.constant 0 : index
      %31 = vector.load %arg12[%c0_31, %c0_32] : memref<16x32xf32, #tpu.memory_space<vmem>>, vector<16x32xf32>
      tpu.vector_store %arg12[%c0_31, %c0_32], %30 {strides = array<i32>} : memref<16x32xf32, #tpu.memory_space<vmem>>, vector<16x32xf32>,
    } else {
    }
    %c0 = arith.constant 0 : index
    %c0_1 = arith.constant 0 : index
    %3 = vector.load %arg3[%c0, %c0_1] : memref<16x32xf32, #tpu.memory_space<vmem>>, vector<16x32xf32>
    %4 = arith.truncf %3 : vector<16x32xf32> to vector<16x32xbf16>
    %c0_2 = arith.constant 0 : index
    %c0_3 = arith.constant 0 : index
    %5 = vector.load %arg10[%c0_2, %c0_3] : memref<16x32xf32, #tpu.memory_space<vmem>>, vector<16x32xf32>
    %c0_4 = arith.constant 0 : index
    %c0_5 = arith.constant 0 : index
    %6 = vector.load %arg4[%c0_4, %c0_5] : memref<32x32xf32, #tpu.memory_space<vmem>>, vector<32x32xf32>
    %7 = arith.truncf %6 : vector<32x32xf32> to vector<32x32xbf16>
    %cst = arith.constant dense<0.000000e+00> : vector<16x32xf32>
    %8 = tpu.matmul %4, %7, %cst {dimension_numbers = #tpu.dot_dimension_numbers<[1], [0], [0], [1], [0, 0, 1, 1], [], []>} : vector<16x32xbf16>, vector<32x32xbf16>, vector<16x32xf32> -> vector<16x32xf32>
    %9 = arith.addf %5, %8 : vector<16x32xf32>
    %c0_6 = arith.constant 0 : index
    %c0_7 = arith.constant 0 : index
    %10 = vector.load %arg10[%c0_6, %c0_7] : memref<16x32xf32, #tpu.memory_space<vmem>>, vector<16x32xf32>
    tpu.vector_store %arg10[%c0_6, %c0_7], %9 {strides = array<i32>} : memref<16x32xf32, #tpu.memory_space<vmem>>, vector<16x32xf32>,
    %c0_8 = arith.constant 0 : index
    %c0_9 = arith.constant 0 : index
    %11 = vector.load %arg11[%c0_8, %c0_9] : memref<16x32xf32, #tpu.memory_space<vmem>>, vector<16x32xf32>
    %c0_10 = arith.constant 0 : index
    %c0_11 = arith.constant 0 : index
    %12 = vector.load %arg5[%c0_10, %c0_11] : memref<32x32xf32, #tpu.memory_space<vmem>>, vector<32x32xf32>
    %13 = arith.truncf %12 : vector<32x32xf32> to vector<32x32xbf16>
    %cst_12 = arith.constant dense<0.000000e+00> : vector<16x32xf32>
    %14 = tpu.matmul %4, %13, %cst_12 {dimension_numbers = #tpu.dot_dimension_numbers<[1], [0], [0], [1], [0, 0, 1, 1], [], []>} : vector<16x32xbf16>, vector<32x32xbf16>, vector<16x32xf32> -> vector<16x32xf32>
    %15 = arith.addf %11, %14 : vector<16x32xf32>
    %c0_13 = arith.constant 0 : index
    %c0_14 = arith.constant 0 : index
    %16 = vector.load %arg11[%c0_13, %c0_14] : memref<16x32xf32, #tpu.memory_space<vmem>>, vector<16x32xf32>
    tpu.vector_store %arg11[%c0_13, %c0_14], %15 {strides = array<i32>} : memref<16x32xf32, #tpu.memory_space<vmem>>, vector<16x32xf32>,
    %c0_15 = arith.constant 0 : index
    %c0_16 = arith.constant 0 : index
    %17 = vector.load %arg12[%c0_15, %c0_16] : memref<16x32xf32, #tpu.memory_space<vmem>>, vector<16x32xf32>
    %c0_17 = arith.constant 0 : index
    %c0_18 = arith.constant 0 : index
    %18 = vector.load %arg6[%c0_17, %c0_18] : memref<32x32xf32, #tpu.memory_space<vmem>>, vector<32x32xf32>
    %19 = arith.truncf %18 : vector<32x32xf32> to vector<32x32xbf16>
    %cst_19 = arith.constant dense<0.000000e+00> : vector<16x32xf32>
    %20 = tpu.matmul %4, %19, %cst_19 {dimension_numbers = #tpu.dot_dimension_numbers<[1], [0], [0], [1], [0, 0, 1, 1], [], []>} : vector<16x32xbf16>, vector<32x32xbf16>, vector<16x32xf32> -> vector<16x32xf32>
    %21 = arith.addf %17, %20 : vector<16x32xf32>
    %c0_20 = arith.constant 0 : index
    %c0_21 = arith.constant 0 : index
    %22 = vector.load %arg12[%c0_20, %c0_21] : memref<16x32xf32, #tpu.memory_space<vmem>>, vector<16x32xf32>
    tpu.vector_store %arg12[%c0_20, %c0_21], %21 {strides = array<i32>} : memref<16x32xf32, #tpu.memory_space<vmem>>, vector<16x32xf32>,
    %c0_i32_22 = arith.constant 0 : i32
    %23 = arith.cmpi eq, %arg2, %c0_i32_22 : i32
    %24 = arith.extui %23 : i1 to i32
    %c0_i32_23 = arith.constant 0 : i32
    %25 = arith.cmpi ne, %24, %c0_i32_23 : i32
    scf.if %25 {
      %c0_24 = arith.constant 0 : index
      %c0_25 = arith.constant 0 : index
      %26 = vector.load %arg10[%c0_24, %c0_25] : memref<16x32xf32, #tpu.memory_space<vmem>>, vector<16x32xf32>
      %cst_26 = arith.constant 5.000000e-01 : f32
      %27 = vector.broadcast %cst_26 : f32 to vector<16x32xf32>
      %28 = arith.mulf %26, %27 : vector<16x32xf32>
      %29 = arith.truncf %28 : vector<16x32xf32> to vector<16x32xbf16>
      %c0_27 = arith.constant 0 : index
      %c0_28 = arith.constant 0 : index
      %30 = vector.load %arg7[%c0_27, %c0_28] : memref<16x32xbf16, #tpu.memory_space<vmem>>, vector<16x32xbf16>
      tpu.vector_store %arg7[%c0_27, %c0_28], %29 {strides = array<i32>} : memref<16x32xbf16, #tpu.memory_space<vmem>>, vector<16x32xbf16>,
      %c0_29 = arith.constant 0 : index
      %c0_30 = arith.constant 0 : index
      %31 = vector.load %arg11[%c0_29, %c0_30] : memref<16x32xf32, #tpu.memory_space<vmem>>, vector<16x32xf32>
      %32 = arith.truncf %31 : vector<16x32xf32> to vector<16x32xbf16>
      %c0_31 = arith.constant 0 : index
      %c0_32 = arith.constant 0 : index
      %33 = vector.load %arg8[%c0_31, %c0_32] : memref<16x32xbf16, #tpu.memory_space<vmem>>, vector<16x32xbf16>
      tpu.vector_store %arg8[%c0_31, %c0_32], %32 {strides = array<i32>} : memref<16x32xbf16, #tpu.memory_space<vmem>>, vector<16x32xbf16>,
      %c0_33 = arith.constant 0 : index
      %c0_34 = arith.constant 0 : index
      %34 = vector.load %arg12[%c0_33, %c0_34] : memref<16x32xf32, #tpu.memory_space<vmem>>, vector<16x32xf32>
      %35 = arith.truncf %34 : vector<16x32xf32> to vector<16x32xbf16>
      %c0_35 = arith.constant 0 : index
      %c0_36 = arith.constant 0 : index
      %36 = vector.load %arg9[%c0_35, %c0_36] : memref<16x32xbf16, #tpu.memory_space<vmem>>, vector<16x32xbf16>
      tpu.vector_store %arg9[%c0_35, %c0_36], %35 {strides = array<i32>} : memref<16x32xbf16, #tpu.memory_space<vmem>>, vector<16x32xbf16>,
    } else {
    }
    return
  }
  func.func @transform_0(%arg0: i32, %arg1: i32, %arg2: i32) -> (i32, i32) {
    %c0_i32 = arith.constant 0 : i32
    return %arg0, %arg2 : i32, i32
  }
  func.func @transform_1(%arg0: i32, %arg1: i32, %arg2: i32) -> (i32, i32) {
    %c0_i32 = arith.constant 0 : i32
    return %arg2, %arg1 : i32, i32
  }
  func.func @transform_2(%arg0: i32, %arg1: i32, %arg2: i32) -> (i32, i32) {
    %c0_i32 = arith.constant 0 : i32
    return %arg2, %arg1 : i32, i32
  }
  func.func @transform_3(%arg0: i32, %arg1: i32, %arg2: i32) -> (i32, i32) {
    %c0_i32 = arith.constant 0 : i32
    return %arg2, %arg1 : i32, i32
  }
  func.func @transform_4(%arg0: i32, %arg1: i32, %arg2: i32) -> (i32, i32) {
    %c0_i32 = arith.constant 0 : i32
    return %arg0, %arg1 : i32, i32
  }
  func.func @transform_5(%arg0: i32, %arg1: i32, %arg2: i32) -> (i32, i32) {
    %c0_i32 = arith.constant 0 : i32
    return %arg0, %arg1 : i32, i32
  }
  func.func @transform_6(%arg0: i32, %arg1: i32, %arg2: i32) -> (i32, i32) {
    %c0_i32 = arith.constant 0 : i32
    return %arg0, %arg1 : i32, i32
  }
}

</mosaic_0001>

<llo_original>
// kernel: tpu_custom_call.1
$region0: #{tpu_custom_call.1}
  #allocation0 [shape = 'u32[]', space=smem, size = 0x4, offset = 0x4, fixed_abs, tag = 'smem constant byte address 0x4 - core index']
  #allocation1 [shape = 'u32[144,128]{1,0:T(1,128)}', space=vmem, size = 0x12000, scoped, tag = 'internal scratch']
  #allocation2 [shape = 'f32[16,32]{1,0:T(8,128)}', space=vmem, size = 0x2000, scoped, tag = 'scratch operand']
  #allocation3 [shape = 'f32[16,32]{1,0:T(8,128)}', space=vmem, size = 0x2000, scoped, tag = 'scratch operand']
  #allocation4 [shape = 'f32[16,32]{1,0:T(8,128)}', space=vmem, size = 0x2000, scoped, tag = 'scratch operand']
  %s0 = inlined_call_operand.hbm [shape: f32[16,32], index: 0, kind: input, shape index: {}]
  %s1 = inlined_call_operand.hbm [shape: f32[32,32], index: 1, kind: input, shape index: {}]
  %s2 = inlined_call_operand.hbm [shape: f32[32,32], index: 2, kind: input, shape index: {}]
  %s3 = inlined_call_operand.hbm [shape: f32[32,32], index: 3, kind: input, shape index: {}]
  %s4 = inlined_call_operand.hbm [shape: bf16[16,32], index: 4, kind: output, shape index: {0}]
  %s5 = inlined_call_operand.hbm [shape: bf16[16,32], index: 5, kind: output, shape index: {1}]
  %s6 = inlined_call_operand.hbm [shape: bf16[16,32], index: 6, kind: output, shape index: {2}]
  %7 = xla_tuple %s4, %s5, %s6
  %s8 = sld [smem:[#allocation0]]
  $region66: #{tpu_custom_call.1} parent=0
    _
  %s10 = ssub.s32 1, %s8
  %s11 = scalar_select 0, %s10, %s8
  $region1: #{tpu_custom_call.1} parent=0
    #allocation5 [shape = 'u8[8192]{0}', space=vmem, size = 0x2000, scoped, tag = 'input window, operand 0, single buffered']
    #allocation6 [shape = 's32[1]{0}', space=sflag, size = 0x4, scoped, tag = 'scoped memory for tpu_custom_call.1']
    #allocation7 [shape = 's32[1]{0}', space=sflag, size = 0x4, scoped, tag = 'scoped memory for tpu_custom_call.1']
    #allocation8 [shape = 'u8[16384]{0}', space=vmem, size = 0x4000, scoped, tag = 'input window, operand 1, single buffered']
    #allocation9 [shape = 's32[1]{0}', space=sflag, size = 0x4, scoped, tag = 'scoped memory for tpu_custom_call.1']
    #allocation10 [shape = 'u8[16384]{0}', space=vmem, size = 0x4000, scoped, tag = 'input window, operand 2, single buffered']
    #allocation11 [shape = 'u8[16384]{0}', space=vmem, size = 0x4000, scoped, tag = 'input window, operand 3, single buffered']
    #allocation12 [shape = 's32[1]{0}', space=sflag, size = 0x4, scoped, tag = 'scoped memory for tpu_custom_call.1']
    #allocation13 [shape = 'u8[4096]{0}', space=vmem, size = 0x1000, scoped, tag = 'output window, operand 0, single buffered']
    #allocation14 [shape = 'u8[4096]{0}', space=vmem, size = 0x1000, scoped, tag = 'output window, operand 1, single buffered']
    #allocation15 [shape = 's32[1]{0}', space=sflag, size = 0x4, scoped, tag = 'scoped memory for tpu_custom_call.1']
    #allocation16 [shape = 'u8[4096]{0}', space=vmem, size = 0x1000, scoped, tag = 'output window, operand 2, single buffered']
    %12 = vsyncpa [#allocation6], 0
    %13 = vsyncpa [#allocation9], 0
    %14 = vsyncpa [#allocation12], 0
    %15 = vsyncpa [#allocation7], 0
    %16 = vsyncpa [#allocation15], 0
    // Predicated region
    $region2: #{tpu_custom_call.1} parent=1 // pred_check
      _
    $region3: #{tpu_custom_call.1} parent=1 // pred_check_branch
      %18 = sbr.rel (0) target = $region5
    $region4: #{tpu_custom_call.1} parent=1 // pred_region
      %s20 = ssub.s32 256, 256
      %21 = vsyncadd [#allocation6], %s20
      %s22 = sshll.u32 [#allocation5], 4
      %s23 = int_to_ptr.vmem [resolvable:$true] %s22
      %28 = dma.hbm_to_vmem [thread:$0]  %s0, 256, %s23, [#allocation6], 128, 128, 8
    $region5: #{tpu_custom_call.1} parent=1 // pred_fallthru
      _
    // Predicated region
    $region6: #{tpu_custom_call.1} parent=1 // pred_check
      _
    $region7: #{tpu_custom_call.1} parent=1 // pred_check_branch
      %30 = sbr.rel (0) target = $region9
    $region8: #{tpu_custom_call.1} parent=1 // pred_region
      %s32 = ssub.s32 512, 512
      %33 = vsyncadd [#allocation9], %s32
      %s34 = sshll.u32 [#allocation8], 4
      %s35 = int_to_ptr.vmem [resolvable:$true] %s34
      %40 = dma.hbm_to_vmem [thread:$0]  %s1, 512, %s35, [#allocation9], 128, 128, 8
    $region9: #{tpu_custom_call.1} parent=1 // pred_fallthru
      _
    // Predicated region
    $region10: #{tpu_custom_call.1} parent=1 // pred_check
      _
    $region11: #{tpu_custom_call.1} parent=1 // pred_check_branch
      %42 = sbr.rel (0) target = $region13
    $region12: #{tpu_custom_call.1} parent=1 // pred_region
      %s44 = ssub.s32 512, 512
      %45 = vsyncadd [#allocation9], %s44
      %s46 = sshll.u32 [#allocation10], 4
      %s47 = int_to_ptr.vmem [resolvable:$true] %s46
      %52 = dma.hbm_to_vmem [thread:$0]  %s2, 512, %s47, [#allocation9], 128, 128, 8
    $region13: #{tpu_custom_call.1} parent=1 // pred_fallthru
      _
    // Predicated region
    $region14: #{tpu_custom_call.1} parent=1 // pred_check
      _
    $region15: #{tpu_custom_call.1} parent=1 // pred_check_branch
      %54 = sbr.rel (0) target = $region17
    $region16: #{tpu_custom_call.1} parent=1 // pred_region
      %s56 = ssub.s32 512, 512
      %57 = vsyncadd [#allocation12], %s56
      %s58 = sshll.u32 [#allocation11], 4
      %s59 = int_to_ptr.vmem [resolvable:$true] %s58
      %64 = dma.hbm_to_vmem [thread:$0]  %s3, 512, %s59, [#allocation12], 128, 128, 8
    $region17: #{tpu_custom_call.1} parent=1 // pred_fallthru
      _
    // Predicated region
    $region18: #{tpu_custom_call.1} parent=1 // pred_check
      _
    $region19: #{tpu_custom_call.1} parent=1 // pred_check_branch
      %66 = sbr.rel (0) target = $region21
    $region20: #{tpu_custom_call.1} parent=1 // pred_region
      %67 = dma.done [#allocation6], 256
    $region21: #{tpu_custom_call.1} parent=1 // pred_fallthru
      _
    // Predicated region
    $region22: #{tpu_custom_call.1} parent=1 // pred_check
      _
    $region23: #{tpu_custom_call.1} parent=1 // pred_check_branch
      %69 = sbr.rel (0) target = $region25
    $region24: #{tpu_custom_call.1} parent=1 // pred_region
      %70 = dma.done [#allocation9], 512
    $region25: #{tpu_custom_call.1} parent=1 // pred_fallthru
      _
    // Predicated region
    $region26: #{tpu_custom_call.1} parent=1 // pred_check
      _
    $region27: #{tpu_custom_call.1} parent=1 // pred_check_branch
      %72 = sbr.rel (0) target = $region29
    $region28: #{tpu_custom_call.1} parent=1 // pred_region
      %73 = dma.done [#allocation9], 512
    $region29: #{tpu_custom_call.1} parent=1 // pred_fallthru
      _
    // Predicated region
    $region30: #{tpu_custom_call.1} parent=1 // pred_check
      _
    $region31: #{tpu_custom_call.1} parent=1 // pred_check_branch
      %75 = sbr.rel (0) target = $region33
    $region32: #{tpu_custom_call.1} parent=1 // pred_region
      %76 = dma.done [#allocation12], 512
    $region33: #{tpu_custom_call.1} parent=1 // pred_fallthru
      _
    %p78 = scmp.eq.s32.totalorder 0, 0
    // Predicated region
    $region34: #{tpu_custom_call.1} parent=1 // pred_check
      %p79 = pneg %p78
    $region35: #{tpu_custom_call.1} parent=1 // pred_check_branch
      %81 = sbr.rel (%p79) target = $region37
    $region36: #{tpu_custom_call.1} parent=1 // pred_region
      %vm82 = vcmask 261120
      %83 = vst.msk [vmem:[#allocation2] sm:$0xff] %vm82, 0.0
      %84 = vst.msk [vmem:[#allocation2 + $0x8] sm:$0xff] %vm82, 0.0
      %85 = vst.msk [vmem:[#allocation3] sm:$0xff] %vm82, 0.0
      %86 = vst.msk [vmem:[#allocation3 + $0x8] sm:$0xff] %vm82, 0.0
      %87 = vst.msk [vmem:[#allocation4] sm:$0xff] %vm82, 0.0
      %88 = vst.msk [vmem:[#allocation4 + $0x8] sm:$0xff] %vm82, 0.0
    $region37: #{tpu_custom_call.1} parent=1 // pred_fallthru
      _
    %v89 = vld [vmem:[#allocation5] sm:$0xff]
    %v90 = vld [vmem:[#allocation5 + $0x8] sm:$0xff]
    %v91 = vpack.c.bf16 %v90, %v89
    %v92 = vld [vmem:[#allocation2] sm:$0xff]
    %v93 = vld [vmem:[#allocation2 + $0x8] sm:$0xff]
    %v94 = vld [vmem:[#allocation8] sm:$0xff]
    %v95 = vld [vmem:[#allocation8 + $0x8] sm:$0xff]
    %v96 = vld [vmem:[#allocation8 + $0x10] sm:$0xff]
    %v97 = vld [vmem:[#allocation8 + $0x18] sm:$0xff]
    %v98 = vpack.c.bf16 %v95, %v94
    %v99 = vpack.c.bf16 %v97, %v96
    %vm100 = vcmask 261120
    %v102 = vsel %vm100, %v91, 0
    %104 = vmatprep.subr.bf16.mxu0 0
    %105 = vmatpush1.bf16.msra.mxu0 %v98
    %106 = vmatprep.subr.bf16.mxu0 0
    %107 = vmatpush1.bf16.msra.mxu0 %v99
    %108 = vmatprep.subr.bf16.mxu0 0
    %109 = vmatpush1.bf16.msra.mxu0 0
    %110 = vmatprep.subr.bf16.mxu0 0
    %111 = vmatpush1.bf16.msra.mxu0 0
    %112 = vmatprep.subr.bf16.mxu0 0
    %113 = vmatpush1.bf16.msra.mxu0 0
    %114 = vmatprep.subr.bf16.mxu0 0
    %115 = vmatpush1.bf16.msra.mxu0 0
    %116 = vmatprep.subr.bf16.mxu0 0
    %117 = vmatpush1.bf16.msra.mxu0 0
    %118 = vmatprep.subr.bf16.mxu0 0
    %119 = vmatpush1.bf16.msra.mxu0 0
    %120 = vmatprep.subr.bf16.mxu0 0
    %121 = vmatpush1.bf16.msra.mxu0 0
    %122 = vmatprep.subr.bf16.mxu0 0
    %123 = vmatpush1.bf16.msra.mxu0 0
    %124 = vmatprep.subr.bf16.mxu0 0
    %125 = vmatpush1.bf16.msra.mxu0 0
    %126 = vmatprep.subr.bf16.mxu0 0
    %127 = vmatpush1.bf16.msra.mxu0 0
    %128 = vmatprep.subr.bf16.mxu0 0
    %129 = vmatpush1.bf16.msra.mxu0 0
    %130 = vmatprep.subr.bf16.mxu0 0
    %131 = vmatpush1.bf16.msra.mxu0 0
    %132 = vmatprep.subr.bf16.mxu0 0
    %133 = vmatpush1.bf16.msra.mxu0 0
    %134 = vmatprep.subr.bf16.mxu0 0
    %135 = vmatpush1.bf16.msra.mxu0 0
    %136 = vmatprep.mubr.bf16.mxu0 0
    %137 = vmatmul.mubr.bf16.gmra.mrb[0].mxu0 %v102
    %v138 = vpop.f32.mrb[0].mxu0
    %v139 = vadd.f32 0.0, %v138
    %v140 = vpop.f32.mrb[0].mxu0
    %v141 = vpop.f32.mrb[0].mxu0
    %v142 = vadd.f32 0.0, %v141
    %v143 = vpop.f32.mrb[0].mxu0
    %144 = vdwg.mxu0
    %v145 = vadd.f32 %v92, %v139
    %v146 = vadd.f32 %v93, %v142
    %147 = vst.msk [vmem:[#allocation2] sm:$0xff] %vm100, %v145
    %148 = vst.msk [vmem:[#allocation2 + $0x8] sm:$0xff] %vm100, %v146
    %v149 = vld [vmem:[#allocation3] sm:$0xff]
    %v150 = vld [vmem:[#allocation3 + $0x8] sm:$0xff]
    %v151 = vld [vmem:[#allocation10] sm:$0xff]
    %v152 = vld [vmem:[#allocation10 + $0x8] sm:$0xff]
    %v153 = vld [vmem:[#allocation10 + $0x10] sm:$0xff]
    %v154 = vld [vmem:[#allocation10 + $0x18] sm:$0xff]
    %v155 = vpack.c.bf16 %v152, %v151
    %v156 = vpack.c.bf16 %v154, %v153
    %157 = vmatprep.subr.bf16.mxu0 0
    %158 = vmatpush1.bf16.msra.mxu0 %v155
    %159 = vmatprep.subr.bf16.mxu0 0
    %160 = vmatpush1.bf16.msra.mxu0 %v156
    %161 = vmatprep.subr.bf16.mxu0 0
    %162 = vmatpush1.bf16.msra.mxu0 0
    %163 = vmatprep.subr.bf16.mxu0 0
    %164 = vmatpush1.bf16.msra.mxu0 0
    %165 = vmatprep.subr.bf16.mxu0 0
    %166 = vmatpush1.bf16.msra.mxu0 0
    %167 = vmatprep.subr.bf16.mxu0 0
    %168 = vmatpush1.bf16.msra.mxu0 0
    %169 = vmatprep.subr.bf16.mxu0 0
    %170 = vmatpush1.bf16.msra.mxu0 0
    %171 = vmatprep.subr.bf16.mxu0 0
    %172 = vmatpush1.bf16.msra.mxu0 0
    %173 = vmatprep.subr.bf16.mxu0 0
    %174 = vmatpush1.bf16.msra.mxu0 0
    %175 = vmatprep.subr.bf16.mxu0 0
    %176 = vmatpush1.bf16.msra.mxu0 0
    %177 = vmatprep.subr.bf16.mxu0 0
    %178 = vmatpush1.bf16.msra.mxu0 0
    %179 = vmatprep.subr.bf16.mxu0 0
    %180 = vmatpush1.bf16.msra.mxu0 0
    %181 = vmatprep.subr.bf16.mxu0 0
    %182 = vmatpush1.bf16.msra.mxu0 0
    %183 = vmatprep.subr.bf16.mxu0 0
    %184 = vmatpush1.bf16.msra.mxu0 0
    %185 = vmatprep.subr.bf16.mxu0 0
    %186 = vmatpush1.bf16.msra.mxu0 0
    %187 = vmatprep.subr.bf16.mxu0 0
    %188 = vmatpush1.bf16.msra.mxu0 0
    %189 = vmatprep.mubr.bf16.mxu0 0
    %190 = vmatmul.mubr.bf16.gmra.mrb[0].mxu0 %v102
    %v191 = vpop.f32.mrb[0].mxu0
    %v192 = vadd.f32 0.0, %v191
    %v193 = vpop.f32.mrb[0].mxu0
    %v194 = vpop.f32.mrb[0].mxu0
    %v195 = vadd.f32 0.0, %v194
    %v196 = vpop.f32.mrb[0].mxu0
    %197 = vdwg.mxu0
    %v198 = vadd.f32 %v149, %v192
    %v199 = vadd.f32 %v150, %v195
    %200 = vst.msk [vmem:[#allocation3] sm:$0xff] %vm100, %v198
    %201 = vst.msk [vmem:[#allocation3 + $0x8] sm:$0xff] %vm100, %v199
    %v202 = vld [vmem:[#allocation4] sm:$0xff]
    %v203 = vld [vmem:[#allocation4 + $0x8] sm:$0xff]
    %v204 = vld [vmem:[#allocation11] sm:$0xff]
    %v205 = vld [vmem:[#allocation11 + $0x8] sm:$0xff]
    %v206 = vld [vmem:[#allocation11 + $0x10] sm:$0xff]
    %v207 = vld [vmem:[#allocation11 + $0x18] sm:$0xff]
    %v208 = vpack.c.bf16 %v205, %v204
    %v209 = vpack.c.bf16 %v207, %v206
    %210 = vmatprep.subr.bf16.mxu0 0
    %211 = vmatpush1.bf16.msra.mxu0 %v208
    %212 = vmatprep.subr.bf16.mxu0 0
    %213 = vmatpush1.bf16.msra.mxu0 %v209
    %214 = vmatprep.subr.bf16.mxu0 0
    %215 = vmatpush1.bf16.msra.mxu0 0
    %216 = vmatprep.subr.bf16.mxu0 0
    %217 = vmatpush1.bf16.msra.mxu0 0
    %218 = vmatprep.subr.bf16.mxu0 0
    %219 = vmatpush1.bf16.msra.mxu0 0
    %220 = vmatprep.subr.bf16.mxu0 0
    %221 = vmatpush1.bf16.msra.mxu0 0
    %222 = vmatprep.subr.bf16.mxu0 0
    %223 = vmatpush1.bf16.msra.mxu0 0
    %224 = vmatprep.subr.bf16.mxu0 0
    %225 = vmatpush1.bf16.msra.mxu0 0
    %226 = vmatprep.subr.bf16.mxu0 0
    %227 = vmatpush1.bf16.msra.mxu0 0
    %228 = vmatprep.subr.bf16.mxu0 0
    %229 = vmatpush1.bf16.msra.mxu0 0
    %230 = vmatprep.subr.bf16.mxu0 0
    %231 = vmatpush1.bf16.msra.mxu0 0
    %232 = vmatprep.subr.bf16.mxu0 0
    %233 = vmatpush1.bf16.msra.mxu0 0
    %234 = vmatprep.subr.bf16.mxu0 0
    %235 = vmatpush1.bf16.msra.mxu0 0
    %236 = vmatprep.subr.bf16.mxu0 0
    %237 = vmatpush1.bf16.msra.mxu0 0
    %238 = vmatprep.subr.bf16.mxu0 0
    %239 = vmatpush1.bf16.msra.mxu0 0
    %240 = vmatprep.subr.bf16.mxu0 0
    %241 = vmatpush1.bf16.msra.mxu0 0
    %242 = vmatprep.mubr.bf16.mxu0 0
    %243 = vmatmul.mubr.bf16.gmra.mrb[0].mxu0 %v102
    %v244 = vpop.f32.mrb[0].mxu0
    %v245 = vadd.f32 0.0, %v244
    %v246 = vpop.f32.mrb[0].mxu0
    %v247 = vpop.f32.mrb[0].mxu0
    %v248 = vadd.f32 0.0, %v247
    %v249 = vpop.f32.mrb[0].mxu0
    %250 = vdwg.mxu0
    %v251 = vadd.f32 %v202, %v245
    %v252 = vadd.f32 %v203, %v248
    %253 = vst.msk [vmem:[#allocation4] sm:$0xff] %vm100, %v251
    %254 = vst.msk [vmem:[#allocation4 + $0x8] sm:$0xff] %vm100, %v252
    // Predicated region
    $region38: #{tpu_custom_call.1} parent=1 // pred_check
      %p255 = pneg %p78
    $region39: #{tpu_custom_call.1} parent=1 // pred_check_branch
      %257 = sbr.rel (%p255) target = $region41
    $region40: #{tpu_custom_call.1} parent=1 // pred_region
      %v258 = vld [vmem:[#allocation2] sm:$0xff]
      %v259 = vld [vmem:[#allocation2 + $0x8] sm:$0xff]
      %v260 = vmul.f32 %v258, 0.5
      %v261 = vmul.f32 %v259, 0.5
      %v262 = vpack.c.bf16 %v261, %v260
      %v264 = vunpack.c.l.b16 %v262
      %v265 = vunpack.c.h.b16 %v262
      %v266 = vpack.c.b16 %v264, %v264
      %v267 = vpack.c.b16 %v265, %v265
      %vm270 = vcmask 257024
      %271 = vst.msk [vmem:[#allocation13] sm:$0xf] %vm270, %v266
      %272 = vst.msk [vmem:[#allocation13 + $0x4] sm:$0xf] %vm270, %v267
      %v273 = vld [vmem:[#allocation3] sm:$0xff]
      %v274 = vld [vmem:[#allocation3 + $0x8] sm:$0xff]
      %v275 = vpack.c.bf16 %v274, %v273
      %v277 = vunpack.c.l.b16 %v275
      %v278 = vunpack.c.h.b16 %v275
      %v279 = vpack.c.b16 %v277, %v277
      %v280 = vpack.c.b16 %v278, %v278
      %283 = vst.msk [vmem:[#allocation14] sm:$0xf] %vm270, %v279
      %284 = vst.msk [vmem:[#allocation14 + $0x4] sm:$0xf] %vm270, %v280
      %v285 = vld [vmem:[#allocation4] sm:$0xff]
      %v286 = vld [vmem:[#allocation4 + $0x8] sm:$0xff]
      %v287 = vpack.c.bf16 %v286, %v285
      %v289 = vunpack.c.l.b16 %v287
      %v290 = vunpack.c.h.b16 %v287
      %v291 = vpack.c.b16 %v289, %v289
      %v292 = vpack.c.b16 %v290, %v290
      %295 = vst.msk [vmem:[#allocation16] sm:$0xf] %vm270, %v291
      %296 = vst.msk [vmem:[#allocation16 + $0x4] sm:$0xf] %vm270, %v292
    $region41: #{tpu_custom_call.1} parent=1 // pred_fallthru
      _
    // Predicated region
    $region42: #{tpu_custom_call.1} parent=1 // pred_check
      _
    $region43: #{tpu_custom_call.1} parent=1 // pred_check_branch
      %298 = sbr.rel (0) target = $region45
    $region44: #{tpu_custom_call.1} parent=1 // pred_region
      %s300 = ssub.s32 128, 128
      %301 = vsyncadd [#allocation7], %s300
      %s302 = sshll.u32 [#allocation13], 4
      %s303 = int_to_ptr.vmem [resolvable:$true] %s302
      %308 = dma.vmem_to_hbm [thread:$0]  %s303, 128, %s4, [#allocation7], 64, 64, 4
    $region45: #{tpu_custom_call.1} parent=1 // pred_fallthru
      _
    // Predicated region
    $region46: #{tpu_custom_call.1} parent=1 // pred_check
      _
    $region47: #{tpu_custom_call.1} parent=1 // pred_check_branch
      %310 = sbr.rel (0) target = $region49
    $region48: #{tpu_custom_call.1} parent=1 // pred_region
      %s312 = ssub.s32 128, 128
      %313 = vsyncadd [#allocation15], %s312
      %s314 = sshll.u32 [#allocation14], 4
      %s315 = int_to_ptr.vmem [resolvable:$true] %s314
      %320 = dma.vmem_to_hbm [thread:$0]  %s315, 128, %s5, [#allocation15], 64, 64, 4
    $region49: #{tpu_custom_call.1} parent=1 // pred_fallthru
      _
    // Predicated region
    $region50: #{tpu_custom_call.1} parent=1 // pred_check
      _
    $region51: #{tpu_custom_call.1} parent=1 // pred_check_branch
      %322 = sbr.rel (0) target = $region53
    $region52: #{tpu_custom_call.1} parent=1 // pred_region
      %s324 = ssub.s32 128, 128
      %325 = vsyncadd [#allocation15], %s324
      %s326 = sshll.u32 [#allocation16], 4
      %s327 = int_to_ptr.vmem [resolvable:$true] %s326
      %332 = dma.vmem_to_hbm [thread:$0]  %s327, 128, %s6, [#allocation15], 64, 64, 4
    $region53: #{tpu_custom_call.1} parent=1 // pred_fallthru
      _
    // Predicated region
    $region54: #{tpu_custom_call.1} parent=1 // pred_check
      _
    $region55: #{tpu_custom_call.1} parent=1 // pred_check_branch
      %334 = sbr.rel (0) target = $region57
    $region56: #{tpu_custom_call.1} parent=1 // pred_region
      %335 = dma.done [#allocation7], 128
    $region57: #{tpu_custom_call.1} parent=1 // pred_fallthru
      _
    // Predicated region
    $region58: #{tpu_custom_call.1} parent=1 // pred_check
      _
    $region59: #{tpu_custom_call.1} parent=1 // pred_check_branch
      %337 = sbr.rel (0) target = $region61
    $region60: #{tpu_custom_call.1} parent=1 // pred_region
      %338 = dma.done [#allocation15], 128
    $region61: #{tpu_custom_call.1} parent=1 // pred_fallthru
      _
    // Predicated region
    $region62: #{tpu_custom_call.1} parent=1 // pred_check
      _
    $region63: #{tpu_custom_call.1} parent=1 // pred_check_branch
      %340 = sbr.rel (0) target = $region65
    $region64: #{tpu_custom_call.1} parent=1 // pred_region
      %341 = dma.done [#allocation15], 128
    $region65: #{tpu_custom_call.1} parent=1 // pred_fallthru
      _
    %342 = vsyncpa [#allocation6], 1
    %343 = vsyncpa [#allocation9], 1
    %344 = vsyncpa [#allocation12], 1
    %345 = vsyncpa [#allocation7], 1
    %346 = vsyncpa [#allocation15], 1

</llo_original>
